<compile_context>
chip_gen: v7x
topology: tpu7x:2x2x1
jax: 0.10.0
libtpu: 0.0.40
codegen_flags: <defaults>
</compile_context>

<pallas_src>
import jax
import jax.numpy as jnp
from jax.experimental import pallas as pl
from jax.experimental.pallas import tpu as pltpu


# ---------------------------------------------------------------------------
# VMEM / tiling policy (safe on v5e / v6e / v7x)
# ---------------------------------------------------------------------------
_VMEM_LIMIT_BYTES = 48 * 1024 * 1024   # explicit scoped limit (> v5e 16 MiB
                                       # default, < v7x 64 MiB physical)
_TILE_VMEM_BUDGET = 24 * 1024 * 1024   # double-buffered live bytes for tiles
_MAX_TILE_ROWS = 4096
_MIN_PALLAS_BYTES = 512 * 1024         # below this, let XLA fuse the concat


def _cparams():
    return pltpu.CompilerParams(
        dimension_semantics=("parallel",),
        vmem_limit_bytes=_VMEM_LIMIT_BYTES,
    )


def _sublane_align(itemsize):
    # Packed sublane minimum: f32 -> 8, bf16 -> 16, int8/fp8 -> 32.
    return max(8, 32 // max(int(itemsize), 1))


def _ceil_to(x, m):
    return -(-x // m) * m


def _row_tile(rows, live_bytes_per_row, itemsize, *,
              vmem_budget=_TILE_VMEM_BUDGET, max_tile=_MAX_TILE_ROWS,
              min_steps=2):
    """Pick a row tile.

    `live_bytes_per_row` must already include double-buffering (2 buffers per
    operand) and any lane padding, so TM * live_bytes_per_row is the real VMEM
    footprint of the pipelined tiles.
    """
    align = _sublane_align(itemsize)
    t = min(vmem_budget // max(live_bytes_per_row, 1), max_tile, rows)

    if t >= rows:
        # Whole array fits in one block.  Still emit >= min_steps grid steps so
        # the "parallel" axis can be sharded across v7x's two TensorCores.
        if rows >= min_steps * align:
            return min(_ceil_to(-(-rows // min_steps), align), rows)
        return rows                      # tiny: full extent, single step

    t = max((t // align) * align, align)
    # Prefer an evenly dividing tile, but only within [t/2, t]: never collapse
    # to a tiny, overhead-dominated tile just to avoid one ragged last block.
    lo = max(t // 2, align)
    for cand in range(t, lo - 1, -align):
        if rows % cand == 0:
            return cand
    return t                             # ragged last block (OOB writes dropped)


# ---------------------------------------------------------------------------
# split_dim == 0 : y = concat([x, x], axis=0)
# x flattened to the widest lane-dense (R, C) slab; output viewed as (2, R, C).
# One input tile read, stored into both output halves (theoretical minimum
# traffic: 1x read + 2x write).
# ---------------------------------------------------------------------------
def _dup_rows_kernel(x_ref, o_ref):
    v = x_ref[...]
    o_ref[0, :, :] = v
    o_ref[1, :, :] = v


def _split0_pallas(x):
    orig_shape = x.shape
    total = x.size
    itemsize = x.dtype.itemsize
    # Widest lane-dense flatten -> fewer, wider unmasked vst per vreg row.
    C = next(c for c in (1024, 512, 256, 128) if total % c == 0)
    xf = x.reshape(-1, C)
    R = xf.shape[0]
    # 2 buffers x (1 input tile + 2-wide output tile) per row.
    live_bytes_per_row = 2 * 3 * C * itemsize
    TM = _row_tile(R, live_bytes_per_row, itemsize)

    out = pl.pallas_call(
        _dup_rows_kernel,
        out_shape=jax.ShapeDtypeStruct((2, R, C), x.dtype),
        grid=(pl.cdiv(R, TM),),
        in_specs=[pl.BlockSpec((TM, C), lambda i: (i, 0))],
        out_specs=pl.BlockSpec((2, TM, C), lambda i: (0, i, 0)),
        compiler_params=_cparams(),
    )(xf)
    return out.reshape((2 * orig_shape[0],) + tuple(orig_shape[1:]))


# ---------------------------------------------------------------------------
# split_dim == -1 : y = concat([x, x], axis=-1) (+ optional additive mask)
# x flattened to (R, D); output (R, 2D); two static, lane-aligned slice stores
# (only used when D % 128 == 0 so both stores are unmasked full-lane vst).
# Adding the mask before duplicating is equivalent to concat-then-add because
# the mask broadcasts identically over both D-wide halves.
# ---------------------------------------------------------------------------
def _dup_last_kernel(x_ref, o_ref):
    d = x_ref.shape[-1]
    v = x_ref[...]
    o_ref[:, :d] = v
    o_ref[:, d:] = v


def _dup_last_mask_kernel(x_ref, m_ref, o_ref):
    d = x_ref.shape[-1]
    v = x_ref[...] + m_ref[...]          # (TM,1) lane-broadcast over D (VPU)
    o_ref[:, :d] = v
    o_ref[:, d:] = v


def _split_last_pallas(x, input_mask):
    lead = x.shape[:-1]
    D = x.shape[-1]
    R = x.size // D
    itemsize = x.dtype.itemsize
    xf = x.reshape(R, D)

    # 2 buffers x (D-wide input + 2D-wide output) per row; the (TM, 1) mask
    # tile is lane-padded to 128 in VMEM (2 buffers).
    live_bytes_per_row = 2 * 3 * D * itemsize
    if input_mask is not None:
        live_bytes_per_row += 2 * 128 * itemsize
    TM = _row_tile(R, live_bytes_per_row, itemsize)
    grid = (pl.cdiv(R, TM),)
    out_shape = jax.ShapeDtypeStruct((R, 2 * D), x.dtype)

    if input_mask is None:
        out = pl.pallas_call(
            _dup_last_kernel,
            out_shape=out_shape,
            grid=grid,
            in_specs=[pl.BlockSpec((TM, D), lambda i: (i, 0))],
            out_specs=pl.BlockSpec((TM, 2 * D), lambda i: (i, 0)),
            compiler_params=_cparams(),
        )(xf)
    else:
        # PyTorch's in-place `y += mask` keeps y's dtype; cast mask to match.
        mf = input_mask.reshape(R, 1).astype(x.dtype)
        out = pl.pallas_call(
            _dup_last_mask_kernel,
            out_shape=out_shape,
            grid=grid,
            in_specs=[
                pl.BlockSpec((TM, D), lambda i: (i, 0)),
                pl.BlockSpec((TM, 1), lambda i: (i, 0)),
            ],
            out_specs=pl.BlockSpec((TM, 2 * D), lambda i: (i, 0)),
            compiler_params=_cparams(),
        )(xf, mf)
    return out.reshape(tuple(lead) + (2 * D,))


# ---------------------------------------------------------------------------
# Fallback (lets XLA fuse tiny / oddly-shaped duplicates into the consumer)
# ---------------------------------------------------------------------------
def _reference(x, input_mask, split_dim):
    y = jnp.concatenate([x, x], axis=split_dim)
    if input_mask is not None:
        y = y + input_mask[..., None].astype(y.dtype)
    return y


# ---------------------------------------------------------------------------
# Public wrapper mirroring InputAdapter.forward
# ---------------------------------------------------------------------------
def input_adapter(x, input_mask=None, split_dim=0, *,
                  min_pallas_bytes=_MIN_PALLAS_BYTES):
    if input_mask is not None:
        assert split_dim == -1, "TODO for other dimensions"

    nbytes = x.size * x.dtype.itemsize
    small = nbytes < min_pallas_bytes

    if split_dim == 0:
        # Non lane-dense flatten would force masked stores; let XLA handle it.
        if small or x.size % 128 != 0:
            return _reference(x, None, 0)
        return _split0_pallas(x)

    if split_dim in (-1, x.ndim - 1):
        D = x.shape[-1]
        # D not a lane multiple -> second-half store would be lane-rotated and
        # masked (vst.msk); jnp/XLA is the better choice there.
        if small or D % 128 != 0:
            return _reference(x, input_mask, -1)
        if input_mask is not None:
            assert input_mask.size == x.size // D, "mask must match leading dims"
        return _split_last_pallas(x, input_mask)

    # Other split dims: plain concat (mask is only legal for -1 per the module).
    return _reference(x, None, split_dim)


if __name__ == "__main__":
    key = jax.random.PRNGKey(0)
    kx, km, kb, kc, kd = jax.random.split(key, 5)

    # --- Small shapes consistent with the module (fused fallback path) ------
    B, S, D = 2, 8, 32
    x = jax.random.normal(kx, (B, S, D), dtype=jnp.float32)
    mask = jax.random.normal(km, (B, S), dtype=jnp.float32)

    y0 = jax.block_until_ready(input_adapter(x, split_dim=0))
    assert y0.shape == (2 * B, S, D)
    assert jnp.allclose(y0, jnp.concatenate([x, x], axis=0), atol=1e-6)

    y1 = jax.block_until_ready(input_adapter(x, input_mask=mask, split_dim=-1))
    ref1 = jnp.concatenate([x, x], axis=-1) + mask[:, :, None]
    assert jnp.allclose(y1, ref1, atol=1e-6, rtol=1e-6)

    # --- Shapes that exercise the Pallas kernels (lane-dense, >=2 steps) ----
    B2, S2, D2 = 2, 256, 128
    xb = jax.random.normal(kb, (B2, S2, D2), dtype=jnp.float32)
    mb = jax.random.normal(km, (B2, S2), dtype=jnp.float32)

    yb0 = jax.block_until_ready(input_adapter(xb, split_dim=0,
                                              min_pallas_bytes=0))
    assert jnp.allclose(yb0, jnp.concatenate([xb, xb], axis=0), atol=1e-6)

    yb1 = jax.block_until_ready(input_adapter(xb, split_dim=-1,
                                              min_pallas_bytes=0))
    assert jnp.allclose(yb1, jnp.concatenate([xb, xb], axis=-1), atol=1e-6)

    yb2 = jax.block_until_ready(input_adapter(xb, input_mask=mb, split_dim=-1,
                                              min_pallas_bytes=0))
    refb2 = jnp.concatenate([xb, xb], axis=-1) + mb[:, :, None]
    assert jnp.allclose(yb2, refb2, atol=1e-6, rtol=1e-6)

    # --- Ragged row count (last block OOB-masked) ----------------------------
    xc = jax.random.normal(kc, (3, 344, 128), dtype=jnp.float32)
    yc = jax.block_until_ready(input_adapter(xc, split_dim=0,
                                             min_pallas_bytes=0))
    assert jnp.allclose(yc, jnp.concatenate([xc, xc], axis=0), atol=1e-6)

    # --- bf16 path (16-row sublane alignment) with mask ----------------------
    xd = jax.random.normal(kd, (4, 200, 128), dtype=jnp.float32).astype(jnp.bfloat16)
    md = jax.random.normal(km, (4, 200), dtype=jnp.float32).astype(jnp.bfloat16)
    yd = jax.block_until_ready(input_adapter(xd, input_mask=md, split_dim=-1,
                                             min_pallas_bytes=0))
    refd = jnp.concatenate([xd, xd], axis=-1) + md[:, :, None]
    assert jnp.allclose(yd.astype(jnp.float32), refd.astype(jnp.float32),
                        atol=1e-2, rtol=1e-2)

    print("KERNEL_OK")
</pallas_src>

<mosaic_0001>
module attributes {stable_mosaic.version = 11 : i64} {
  func.func @_dup_rows_kernel(%arg0: i32, %arg1: memref<32x1024xf32, #tpu.memory_space<vmem>>, %arg2: memref<2x32x1024xf32, #tpu.memory_space<vmem>>) attributes {dimension_semantics = [#tpu.dimension_semantics<parallel>], iteration_bounds = array<i64: 2>, scalar_prefetch = 0 : i64, scratch_operands = 0 : i64, tpu.core_type = #tpu.core_type<tc>, window_params = [{transform_indices = @transform_0, window_bounds = array<i64: 32, 1024>}, {transform_indices = @transform_1, window_bounds = array<i64: 2, 32, 1024>}]} {
    %c0 = arith.constant 0 : index
    %c0_0 = arith.constant 0 : index
    %0 = vector.load %arg1[%c0, %c0_0] : memref<32x1024xf32, #tpu.memory_space<vmem>>, vector<32x1024xf32>
    %c0_1 = arith.constant 0 : index
    %c0_2 = arith.constant 0 : index
    %c0_3 = arith.constant 0 : index
    %1 = vector.load %arg2[%c0_1, %c0_2, %c0_3] : memref<2x32x1024xf32, #tpu.memory_space<vmem>>, vector<1x32x1024xf32>
    %2 = vector.shape_cast %1 : vector<1x32x1024xf32> to vector<32x1024xf32>
    %3 = vector.shape_cast %0 : vector<32x1024xf32> to vector<1x32x1024xf32>
    tpu.vector_store %arg2[%c0_1, %c0_2, %c0_3], %3 {strides = array<i32>} : memref<2x32x1024xf32, #tpu.memory_space<vmem>>, vector<1x32x1024xf32>,
    %c1 = arith.constant 1 : index
    %c0_4 = arith.constant 0 : index
    %c0_5 = arith.constant 0 : index
    %4 = vector.load %arg2[%c1, %c0_4, %c0_5] : memref<2x32x1024xf32, #tpu.memory_space<vmem>>, vector<1x32x1024xf32>
    %5 = vector.shape_cast %4 : vector<1x32x1024xf32> to vector<32x1024xf32>
    %6 = vector.shape_cast %0 : vector<32x1024xf32> to vector<1x32x1024xf32>
    tpu.vector_store %arg2[%c1, %c0_4, %c0_5], %6 {strides = array<i32>} : memref<2x32x1024xf32, #tpu.memory_space<vmem>>, vector<1x32x1024xf32>,
    return
  }
  func.func @transform_0(%arg0: i32) -> (i32, i32) {
    %c0_i32 = arith.constant 0 : i32
    %c0_i32_0 = arith.constant 0 : i32
    return %arg0, %c0_i32 : i32, i32
  }
  func.func @transform_1(%arg0: i32) -> (i32, i32, i32) {
    %c0_i32 = arith.constant 0 : i32
    %c0_i32_0 = arith.constant 0 : i32
    %c0_i32_1 = arith.constant 0 : i32
    return %c0_i32, %arg0, %c0_i32_0 : i32, i32, i32
  }
}

</mosaic_0001>

<llo_original>
// kernel: tpu_custom_call.1
$region0: #{tpu_custom_call.1}
  #allocation0 [shape = 'u32[]', space=smem, size = 0x4, offset = 0x4, fixed_abs, tag = 'smem constant byte address 0x4 - core index']
  #allocation1 [shape = 'u32[144,128]{1,0:T(1,128)}', space=vmem, size = 0x12000, scoped, tag = 'internal scratch']
  #allocation6 [shape = 's32[]', space=sflag, size = 0x4, offset = 0, fixed_abs, tag = 'sflag constant byte address 0x0 - dummy sync flag']
  %s0 = inlined_call_operand.hbm [shape: f32[64,1024], index: 0, kind: input, shape index: {}]
  %s1 = inlined_call_operand.hbm [shape: f32[2,64,1024], index: 1, kind: output, shape index: {}]
  %s2 = sld [smem:[#allocation0]]
  $region41: #{tpu_custom_call.1} parent=0
    _
  %s4 = ssub.s32 1, %s2
  %s5 = scalar_select 0, %s4, %s2
  $region1: #{tpu_custom_call.1} parent=0
    #allocation2 [shape = 'u8[262144]{0}', space=vmem, size = 0x40000, scoped, tag = 'input window, operand 0']
    #allocation3 [shape = 's32[2]{0}', space=sflag, size = 0x8, scoped, tag = 'scoped memory for tpu_custom_call.1']
    #allocation4 [shape = 's32[2]{0}', space=sflag, size = 0x8, scoped, tag = 'scoped memory for tpu_custom_call.1']
    #allocation5 [shape = 'u8[524288]{0}', space=vmem, size = 0x80000, scoped, tag = 'output window, operand 0']
    %6 = vsyncpa [#allocation3], 0
    %s7 = scalar_lea.sflag [#allocation3], 1
    %8 = vsyncpa %s7, 0
    %9 = vsyncpa [#allocation4], 0
    %s10 = scalar_lea.sflag [#allocation4], 1
    %11 = vsyncpa %s10, 0
    loop: start=0, step=1, limit=4
    $region2: #{tpu_custom_call.1} parent=1 // loop_pre_header
      _
    $region3: #{tpu_custom_call.1} parent=1 // loop_header
      %s13 = sphi 0, %s17
      %p14 = scmp.ge.s32.totalorder %s13, 4
      %s23 = sphi 0, %s25
      %s26 = sphi 0, %s23
      %s27 = sphi 0, %s26
      %s43 = sphi 0, %s27
      %s49 = sphi 0, %s51
      %s52 = sphi 0, %s49
      %s53 = sphi 0, %s52
      %s69 = sphi 0, %s53
    $region4: #{tpu_custom_call.1} parent=1 // loop_header_branch
      %16 = sbr.rel (%p14) target = $region8
    $region5: #{tpu_custom_call.1} parent=1 // loop_body
      %s18 = ssub.s32 %s13, 1
      %s19 = ssub.s32 %s13, 2
      %s20 = sadd.s32 %s13, 1
      %s21 = ssub.s32 %s13, %s20
      %p22 = scmp.eq.s32.totalorder %s21, 0
      %s24 = sadd.s32 %s23, 1
      %s25 = scalar_select %p22, %s23, %s24
      %p28 = pneg %p22
      %p29 = scmp.eq.s32.totalorder %s13, 1
      %p30 = por %p28, %p29
      %p31 = scmp.ne.s32.totalorder %s23, %s26
      %p32 = scmp.eq.s32.totalorder %s13, 0
      %p33 = por %p31, %p32
      %p34 = scmp.ne.s32.totalorder %s23, %s26
      %p35 = scmp.eq.s32.totalorder %s18, 1
      %p36 = por %p34, %p35
      %p37 = scmp.ne.s32.totalorder %s26, %s27
      %p38 = scmp.eq.s32.totalorder %s18, 0
      %p39 = por %p37, %p38
      %p40 = scmp.ne.s32.totalorder %s26, %s27
      %p41 = scmp.eq.s32.totalorder %s19, 1
      %p42 = por %p40, %p41
      %p44 = scmp.ne.s32.totalorder %s27, %s43
      %p45 = scmp.eq.s32.totalorder %s19, 0
      %p46 = por %p44, %p45
      %s47 = ssub.s32 %s13, %s20
      %p48 = scmp.eq.s32.totalorder %s47, 0
      %s50 = sadd.s32 %s49, 1
      %s51 = scalar_select %p48, %s49, %s50
      %p54 = pneg %p48
      %p55 = scmp.eq.s32.totalorder %s13, 1
      %p56 = por %p54, %p55
      %p57 = scmp.ne.s32.totalorder %s49, %s52
      %p58 = scmp.eq.s32.totalorder %s13, 0
      %p59 = por %p57, %p58
      %p60 = scmp.ne.s32.totalorder %s49, %s52
      %p61 = scmp.eq.s32.totalorder %s18, 1
      %p62 = por %p60, %p61
      %p63 = scmp.ne.s32.totalorder %s52, %s53
      %p64 = scmp.eq.s32.totalorder %s18, 0
      %p65 = por %p63, %p64
      %p66 = scmp.ne.s32.totalorder %s52, %s53
      %p67 = scmp.eq.s32.totalorder %s19, 1
      %p68 = por %p66, %p67
      %p70 = scmp.ne.s32.totalorder %s53, %s69
      %p71 = scmp.eq.s32.totalorder %s19, 0
      %p72 = por %p70, %p71
      %p73 = scmp.le.s32.totalorder 1, %s13
      %p74 = scmp.lt.s32.totalorder %s13, 3
      %p75 = pnand %p73, %p74
      %p76 = pneg %p75
      // Predicated region
      $region9: #{tpu_custom_call.1} parent=5 // pred_check
        _
      $region10: #{tpu_custom_call.1} parent=5 // pred_check_branch
        %78 = sbr.rel (%p75) target = $region12
      $region11: #{tpu_custom_call.1} parent=5 // pred_region
        %s79 = ssub.s32 %s13, 1
      $region12: #{tpu_custom_call.1} parent=5 // pred_fallthru
        _
      %p80 = scmp.lt.s32.totalorder %s13, 2
      // Predicated region
      $region13: #{tpu_custom_call.1} parent=5 // pred_check
        %p81 = pneg %p80
      $region14: #{tpu_custom_call.1} parent=5 // pred_check_branch
        %83 = sbr.rel (%p81) target = $region16
      $region15: #{tpu_custom_call.1} parent=5 // pred_region
        // Predicated region
        $region17: #{tpu_custom_call.1} parent=15 // pred_check
          %p84 = pneg %p33
        $region18: #{tpu_custom_call.1} parent=15 // pred_check_branch
          %86 = sbr.rel (%p84) target = $region20
        $region19: #{tpu_custom_call.1} parent=15 // pred_region
          %s87 = sand.u32 %s23, 1
          %s88 = scalar_lea.sflag [#allocation3], %s87
          %s89 = sand.u32 %s23, 1
          %s90 = smul.addr %s89, 256
          %s91 = scalar_lea.vmem [#allocation2], %s90
          %s92 = smul.u32 4, %s13
          %s94 = ssub.s32 4096, 4096
          %95 = vsyncadd %s88, %s94
          %s96 = smul.addr %s92, 8
          %s97 = smul.addr %s96, 128
          %s98 = scalar_lea.hbm %s0, %s97
          %s99 = sshll.u32 %s91, 4
          %s100 = int_to_ptr.vmem [resolvable:$true] %s99
          %105 = dma.hbm_to_vmem [thread:$0]  %s98, 4096, %s100, %s88, 1024, 1024, 64
        $region20: #{tpu_custom_call.1} parent=15 // pred_fallthru
          _
      $region16: #{tpu_custom_call.1} parent=5 // pred_fallthru
        _
      %p106 = scmp.le.s32.totalorder 1, %s13
      %p107 = scmp.lt.s32.totalorder %s13, 3
      %p108 = pnand %p106, %p107
      %p109 = pneg %p108
      // Predicated region
      $region21: #{tpu_custom_call.1} parent=5 // pred_check
        _
      $region22: #{tpu_custom_call.1} parent=5 // pred_check_branch
        %111 = sbr.rel (%p108) target = $region24
      $region23: #{tpu_custom_call.1} parent=5 // pred_region
        %s112 = ssub.s32 %s13, 1
        %s113 = sand.u32 %s26, 1
        %s114 = scalar_lea.sflag [#allocation3], %s113
        %s115 = sand.u32 %s26, 1
        %s116 = smul.addr %s115, 256
        %s117 = scalar_lea.vmem [#allocation2], %s116
        // Predicated region
        $region25: #{tpu_custom_call.1} parent=23 // pred_check
          %p118 = pneg %p39
        $region26: #{tpu_custom_call.1} parent=23 // pred_check_branch
          %120 = sbr.rel (%p118) target = $region28
        $region27: #{tpu_custom_call.1} parent=23 // pred_region
          %121 = dma.done %s114, 4096
        $region28: #{tpu_custom_call.1} parent=23 // pred_fallthru
          _
        %s122 = sand.u32 %s26, 1
        %s123 = scalar_lea.sflag [#allocation3], %s122
        %s124 = sand.u32 %s26, 1
        %s125 = smul.addr %s124, 256
        %s126 = scalar_lea.vmem [#allocation2], %s125
        %p127 = pneg %p39
        %p128 = pneg %p36
        %p129 = pneg %p65
        %p130 = pneg %p62
        %s131 = sand.u32 %s52, 1
        %s132 = scalar_lea.sflag [#allocation4], %s131
        %s133 = sand.u32 %s52, 1
        %s134 = smul.addr %s133, 512
        %s135 = scalar_lea.vmem [#allocation5], %s134
        %s136 = smul.u32 4, %s18
        %s137 = smul.u32 4, %s18
        %v138 = vld [vmem:[%s117] sm:$0xff]
        %v139 = vld [vmem:[%s117 + $0x8] sm:$0xff]
        %v140 = vld [vmem:[%s117 + $0x10] sm:$0xff]
        %v141 = vld [vmem:[%s117 + $0x18] sm:$0xff]
        %v142 = vld [vmem:[%s117 + $0x20] sm:$0xff]
        %v143 = vld [vmem:[%s117 + $0x28] sm:$0xff]
        %v144 = vld [vmem:[%s117 + $0x30] sm:$0xff]
        %v145 = vld [vmem:[%s117 + $0x38] sm:$0xff]
        %v146 = vld [vmem:[%s117 + $0x40] sm:$0xff]
        %v147 = vld [vmem:[%s117 + $0x48] sm:$0xff]
        %v148 = vld [vmem:[%s117 + $0x50] sm:$0xff]
        %v149 = vld [vmem:[%s117 + $0x58] sm:$0xff]
        %v150 = vld [vmem:[%s117 + $0x60] sm:$0xff]
        %v151 = vld [vmem:[%s117 + $0x68] sm:$0xff]
        %v152 = vld [vmem:[%s117 + $0x70] sm:$0xff]
        %v153 = vld [vmem:[%s117 + $0x78] sm:$0xff]
        %v154 = vld [vmem:[%s117 + $0x80] sm:$0xff]
        %v155 = vld [vmem:[%s117 + $0x88] sm:$0xff]
        %v156 = vld [vmem:[%s117 + $0x90] sm:$0xff]
        %v157 = vld [vmem:[%s117 + $0x98] sm:$0xff]
        %v158 = vld [vmem:[%s117 + $0xa0] sm:$0xff]
        %v159 = vld [vmem:[%s117 + $0xa8] sm:$0xff]
        %v160 = vld [vmem:[%s117 + $0xb0] sm:$0xff]
        %v161 = vld [vmem:[%s117 + $0xb8] sm:$0xff]
        %v162 = vld [vmem:[%s117 + $0xc0] sm:$0xff]
        %v163 = vld [vmem:[%s117 + $0xc8] sm:$0xff]
        %v164 = vld [vmem:[%s117 + $0xd0] sm:$0xff]
        %v165 = vld [vmem:[%s117 + $0xd8] sm:$0xff]
        %v166 = vld [vmem:[%s117 + $0xe0] sm:$0xff]
        %v167 = vld [vmem:[%s117 + $0xe8] sm:$0xff]
        %v168 = vld [vmem:[%s117 + $0xf0] sm:$0xff]
        %v169 = vld [vmem:[%s117 + $0xf8] sm:$0xff]
        %170 = vst [vmem:[%s135] sm:$0xff] %v138
        %171 = vst [vmem:[%s135 + $0x8] sm:$0xff] %v139
        %172 = vst [vmem:[%s135 + $0x10] sm:$0xff] %v140
        %173 = vst [vmem:[%s135 + $0x18] sm:$0xff] %v141
        %174 = vst [vmem:[%s135 + $0x20] sm:$0xff] %v142
        %175 = vst [vmem:[%s135 + $0x28] sm:$0xff] %v143
        %176 = vst [vmem:[%s135 + $0x30] sm:$0xff] %v144
        %177 = vst [vmem:[%s135 + $0x38] sm:$0xff] %v145
        %178 = vst [vmem:[%s135 + $0x40] sm:$0xff] %v146
        %179 = vst [vmem:[%s135 + $0x48] sm:$0xff] %v147
        %180 = vst [vmem:[%s135 + $0x50] sm:$0xff] %v148
        %181 = vst [vmem:[%s135 + $0x58] sm:$0xff] %v149
        %182 = vst [vmem:[%s135 + $0x60] sm:$0xff] %v150
        %183 = vst [vmem:[%s135 + $0x68] sm:$0xff] %v151
        %184 = vst [vmem:[%s135 + $0x70] sm:$0xff] %v152
        %185 = vst [vmem:[%s135 + $0x78] sm:$0xff] %v153
        %186 = vst [vmem:[%s135 + $0x80] sm:$0xff] %v154
        %187 = vst [vmem:[%s135 + $0x88] sm:$0xff] %v155
        %188 = vst [vmem:[%s135 + $0x90] sm:$0xff] %v156
        %189 = vst [vmem:[%s135 + $0x98] sm:$0xff] %v157
        %190 = vst [vmem:[%s135 + $0xa0] sm:$0xff] %v158
        %191 = vst [vmem:[%s135 + $0xa8] sm:$0xff] %v159
        %192 = vst [vmem:[%s135 + $0xb0] sm:$0xff] %v160
        %193 = vst [vmem:[%s135 + $0xb8] sm:$0xff] %v161
        %194 = vst [vmem:[%s135 + $0xc0] sm:$0xff] %v162
        %195 = vst [vmem:[%s135 + $0xc8] sm:$0xff] %v163
        %196 = vst [vmem:[%s135 + $0xd0] sm:$0xff] %v164
        %197 = vst [vmem:[%s135 + $0xd8] sm:$0xff] %v165
        %198 = vst [vmem:[%s135 + $0xe0] sm:$0xff] %v166
        %199 = vst [vmem:[%s135 + $0xe8] sm:$0xff] %v167
        %200 = vst [vmem:[%s135 + $0xf0] sm:$0xff] %v168
        %201 = vst [vmem:[%s135 + $0xf8] sm:$0xff] %v169
        %s202 = scalar_lea.vmem %s135, 256 [#allocation5]
        %203 = vst [vmem:[%s202] sm:$0xff] %v138
        %204 = vst [vmem:[%s202 + $0x8] sm:$0xff] %v139
        %205 = vst [vmem:[%s202 + $0x10] sm:$0xff] %v140
        %206 = vst [vmem:[%s202 + $0x18] sm:$0xff] %v141
        %207 = vst [vmem:[%s202 + $0x20] sm:$0xff] %v142
        %208 = vst [vmem:[%s202 + $0x28] sm:$0xff] %v143
        %209 = vst [vmem:[%s202 + $0x30] sm:$0xff] %v144
        %210 = vst [vmem:[%s202 + $0x38] sm:$0xff] %v145
        %211 = vst [vmem:[%s202 + $0x40] sm:$0xff] %v146
        %212 = vst [vmem:[%s202 + $0x48] sm:$0xff] %v147
        %213 = vst [vmem:[%s202 + $0x50] sm:$0xff] %v148
        %214 = vst [vmem:[%s202 + $0x58] sm:$0xff] %v149
        %215 = vst [vmem:[%s202 + $0x60] sm:$0xff] %v150
        %216 = vst [vmem:[%s202 + $0x68] sm:$0xff] %v151
        %217 = vst [vmem:[%s202 + $0x70] sm:$0xff] %v152
        %218 = vst [vmem:[%s202 + $0x78] sm:$0xff] %v153
        %219 = vst [vmem:[%s202 + $0x80] sm:$0xff] %v154
        %220 = vst [vmem:[%s202 + $0x88] sm:$0xff] %v155
        %221 = vst [vmem:[%s202 + $0x90] sm:$0xff] %v156
        %222 = vst [vmem:[%s202 + $0x98] sm:$0xff] %v157
        %223 = vst [vmem:[%s202 + $0xa0] sm:$0xff] %v158
        %224 = vst [vmem:[%s202 + $0xa8] sm:$0xff] %v159
        %225 = vst [vmem:[%s202 + $0xb0] sm:$0xff] %v160
        %226 = vst [vmem:[%s202 + $0xb8] sm:$0xff] %v161
        %227 = vst [vmem:[%s202 + $0xc0] sm:$0xff] %v162
        %228 = vst [vmem:[%s202 + $0xc8] sm:$0xff] %v163
        %229 = vst [vmem:[%s202 + $0xd0] sm:$0xff] %v164
        %230 = vst [vmem:[%s202 + $0xd8] sm:$0xff] %v165
        %231 = vst [vmem:[%s202 + $0xe0] sm:$0xff] %v166
        %232 = vst [vmem:[%s202 + $0xe8] sm:$0xff] %v167
        %233 = vst [vmem:[%s202 + $0xf0] sm:$0xff] %v168
        %234 = vst [vmem:[%s202 + $0xf8] sm:$0xff] %v169
        %s235 = sand.u32 %s52, 1
        %s236 = scalar_lea.sflag [#allocation4], %s235
        %s237 = sand.u32 %s52, 1
        %s238 = smul.addr %s237, 512
        %s239 = scalar_lea.vmem [#allocation5], %s238
        // Predicated region
        $region29: #{tpu_custom_call.1} parent=23 // pred_check
          %p240 = pneg %p62
        $region30: #{tpu_custom_call.1} parent=23 // pred_check_branch
          %242 = sbr.rel (%p240) target = $region32
        $region31: #{tpu_custom_call.1} parent=23 // pred_region
          #allocation7 [shape = 'u32[6]{0}', space=smem, size = 0x18, scoped, tag = 'DMA stride descriptor']
          %s243 = smul.u32 4, %s18
          %s245 = ssub.s32 8192, 8192
          %246 = vsyncadd %s236, %s245
          %s247 = smul.addr %s243, 8
          %s248 = smul.addr %s247, 128
          %s249 = scalar_lea.hbm %s1, %s248
          %s251 = sshll.u32 1, 14
          %s252 = sxor.u32 4294967295, %s251
          %s255 = sshll.u32 7, 18
          %s256 = sxor.u32 4294967295, %s255
          %s257 = sand.u32 0, %s256
          %s259 = sor.u32 %s257, 0
          %s261 = sshll.u32 3, 24
          %s262 = sxor.u32 4294967295, %s261
          %s263 = sand.u32 %s259, %s262
          %s265 = sor.u32 %s263, 0
          %s266 = sshll.u32 %s239, 4
          %s267 = int_to_ptr.vmem [resolvable:$true] %s266
          %273 = sst [smem:[#allocation7]] 4096
          %s274 = scalar_lea.smem [#allocation7], 1
          %275 = sst [smem:[%s274]] 8192
          %s276 = scalar_lea.smem [#allocation7], 2
          %277 = sst [smem:[%s276]] 4
          %s278 = scalar_lea.smem [#allocation7], 3
          %279 = sst [smem:[%s278]] 1024
          %s280 = scalar_lea.smem [#allocation7], 4
          %281 = sst [smem:[%s280]] 1024
          %s282 = scalar_lea.smem [#allocation7], 5
          %283 = sst [smem:[%s282]] 64
          %285 = dma.general %s267, 8192, %s249, %s236, [#allocation6], [#allocation7], %s265, 0
        $region32: #{tpu_custom_call.1} parent=23 // pred_fallthru
          _
      $region24: #{tpu_custom_call.1} parent=5 // pred_fallthru
        _
      %p286 = scmp.le.s32.totalorder 2, %s13
      // Predicated region
      $region33: #{tpu_custom_call.1} parent=5 // pred_check
        %p287 = pneg %p286
      $region34: #{tpu_custom_call.1} parent=5 // pred_check_branch
        %289 = sbr.rel (%p287) target = $region36
      $region35: #{tpu_custom_call.1} parent=5 // pred_region
        %s290 = ssub.s32 %s13, 2
        // Predicated region
        $region37: #{tpu_custom_call.1} parent=35 // pred_check
          %p291 = pneg %p68
        $region38: #{tpu_custom_call.1} parent=35 // pred_check_branch
          %293 = sbr.rel (%p291) target = $region40
        $region39: #{tpu_custom_call.1} parent=35 // pred_region
          %s294 = sand.u32 %s53, 1
          %s295 = scalar_lea.sflag [#allocation4], %s294
          %s296 = sand.u32 %s53, 1
          %s297 = smul.addr %s296, 512
          %s298 = scalar_lea.vmem [#allocation5], %s297
          %299 = dma.done %s295, 8192
        $region40: #{tpu_custom_call.1} parent=35 // pred_fallthru
          _
      $region36: #{tpu_custom_call.1} parent=5 // pred_fallthru
        _
    $region6: #{tpu_custom_call.1} parent=1 // loop_footer
      %s17 = sadd.s32 1, %s13
    $region7: #{tpu_custom_call.1} parent=1 // loop_footer_branch
      %12 = sbr.rel target = $region3
    $region8: #{tpu_custom_call.1} parent=1 // loop_exit
      _
    %300 = vsyncpa [#allocation3], 1
    %s301 = scalar_lea.sflag [#allocation3], 1
    %302 = vsyncpa %s301, 1
    %303 = vsyncpa [#allocation4], 1
    %s304 = scalar_lea.sflag [#allocation4], 1
    %305 = vsyncpa %s304, 1

</llo_original>
